<compile_context>
chip_gen: v7x
topology: tpu7x:2x2x1
jax: 0.10.0
libtpu: 0.0.40
codegen_flags: <defaults>
</compile_context>

<pallas_src>
import jax
import jax.numpy as jnp
from jax import lax
from jax.experimental import pallas as pl
from jax.experimental.pallas import tpu as pltpu

# Deterministic "parameters" of the STL formula (buffers in STLCG).
A_THRESH = 0.25   # Always(x > A)
B_THRESH = 0.75   # Eventually(x < B)


def _round_up(v, m):
    return ((v + m - 1) // m) * m


def _tile_size(dim, max_tile, align):
    """Tile that is either == dim (tiny dim) or an `align` multiple <= dim."""
    if dim <= align:
        return dim
    return min(_round_up(max_tile, align), (dim // align) * align)


def _small_kernel(x_ref, o_ref):
    """Gridless path: whole (bs, T) signal in one VMEM block."""
    m = jnp.min(x_ref[...].astype(jnp.float32), axis=-1, keepdims=True)
    o_ref[...] = jnp.minimum(m - A_THRESH, B_THRESH - m).astype(o_ref.dtype)


def _make_grid_kernel(T, TM, TK, LANES, n_slices, needs_mask):
    """Streaming path: grid = (batch tiles, time tiles), time is the reduction."""

    def kernel(x_ref, o_ref, acc_ref):
        t = pl.program_id(1)

        @pl.when(t == 0)
        def _init():
            acc_ref[...] = jnp.full(acc_ref.shape, jnp.inf, acc_ref.dtype)

        if needs_mask:
            # Hoisted once per grid step (JAX does not CSE broadcast_in_dim).
            lane = lax.broadcasted_iota(jnp.int32, (TM, LANES), 1)
            base = t * TK

        # Fold the (TM, TK) tile into a lane-dense (TM, LANES) partial min
        # using only 128-lane static column slices (pure VPU, no XLU).
        m = None
        for s in range(n_slices):
            col = x_ref[:, s * LANES:(s + 1) * LANES].astype(jnp.float32)
            if needs_mask:
                valid = (base + s * LANES + lane) < T
                col = jnp.where(valid, col, jnp.inf)
            m = col if m is None else jnp.minimum(m, col)

        acc_ref[...] = jnp.minimum(acc_ref[...], m)

        @pl.when(t == pl.num_programs(1) - 1)
        def _finalize():
            # Single cross-lane (XLU) reduce + epilogue, once per batch tile.
            rm = jnp.min(acc_ref[...], axis=-1, keepdims=True)     # (TM, 1)
            o_ref[...] = jnp.minimum(rm - A_THRESH,
                                     B_THRESH - rm).astype(o_ref.dtype)

    return kernel


def robustness_module(x, *, tm_max=1024, tk_max=2048, small_bytes=1 << 20):
    """JAX/Pallas equivalent of RobustnessModule.forward.

    x: [bs, 1, T, 1] float32/bfloat16  ->  returns [bs] of the same dtype.
    """
    bs = x.shape[0]
    T = x.shape[-2]
    x2 = x.reshape(bs, T)
    if not jnp.issubdtype(x2.dtype, jnp.floating):
        x2 = x2.astype(jnp.float32)
    itemsize = x2.dtype.itemsize
    out_dtype = x2.dtype

    # -------- tiny-workload path: one gridless block, no pipeline overhead --
    if bs * T * itemsize <= small_bytes:
        out = pl.pallas_call(
            _small_kernel,
            out_shape=jax.ShapeDtypeStruct((bs, 1), out_dtype),
        )(x2)
        return out[:, 0]

    # -------- streaming path ------------------------------------------------
    sub = max(8, 32 // itemsize)          # sublane alignment (8 f32, 16 bf16)
    TM = _tile_size(bs, tm_max, sub)
    TK = _tile_size(T, tk_max, 128)

    grid_b = pl.cdiv(bs, TM)
    # v7x has two TensorCores: ensure the 'parallel' batch axis has >= 2 tiles
    # whenever the batch is big enough so both cores get DMA work.
    if grid_b < 2 and bs >= 2 * sub:
        TM = _round_up(-(-bs // 2), sub)
        grid_b = pl.cdiv(bs, TM)
    grid_t = pl.cdiv(T, TK)

    LANES = 128 if TK % 128 == 0 else TK   # TK < 128 only when TK == T
    n_slices = TK // LANES
    needs_mask = (T % TK) != 0             # ragged time tail -> in-kernel mask

    kernel = _make_grid_kernel(T, TM, TK, LANES, n_slices, needs_mask)

    out = pl.pallas_call(
        kernel,
        out_shape=jax.ShapeDtypeStruct((bs, 1), out_dtype),
        grid_spec=pltpu.PrefetchScalarGridSpec(
            num_scalar_prefetch=0,
            grid=(grid_b, grid_t),
            in_specs=[pl.BlockSpec((TM, TK), lambda b, t: (b, t))],
            # Output block constant across the time (reduction) axis; written
            # once per batch tile at the last time step.
            out_specs=pl.BlockSpec((TM, 1), lambda b, t: (b, 0)),
            scratch_shapes=[pltpu.VMEM((TM, LANES), jnp.float32)],
        ),
        compiler_params=pltpu.CompilerParams(
            dimension_semantics=("parallel", "arbitrary"),
            # 2 double-buffered ~8 MiB tiles + lane-dense accumulator < 32 MiB;
            # valid on v5e/v6e (128 MiB physical) and v7x (64 MiB physical).
            vmem_limit_bytes=32 * 1024 * 1024,
        ),
        cost_estimate=pl.CostEstimate(
            flops=bs * T,
            transcendentals=0,
            bytes_accessed=bs * T * itemsize + bs * itemsize,
        ),
    )(x2)
    return out[:, 0]


def robustness_reference(x):
    """Pure-JAX reference for func = Always(x>A) AND Eventually(x<B)."""
    sig = x[:, 0, :, 0]
    m = jnp.min(sig, axis=-1)
    return jnp.minimum(m - A_THRESH, B_THRESH - m)


if __name__ == "__main__":
    key = jax.random.PRNGKey(0)
    k1, k2, k3 = jax.random.split(key, 3)

    # Case 1: benchmark-style shape (bs=4, T=128) -> gridless small path.
    bs, T = 4, 128
    x = jax.random.uniform(k1, (bs, 1, T, 1), dtype=jnp.float32)
    out = jax.block_until_ready(robustness_module(x))
    ref = robustness_reference(x)
    assert out.shape == (bs,)
    assert jnp.allclose(out, ref, atol=1e-6), (out, ref)

    # Case 2: forced tiny tiles -> grid path with ragged batch (10 % 8 != 0)
    # and ragged time tail (300 % 128 != 0), exercising the in-kernel mask.
    bs2, T2 = 10, 300
    x2 = jax.random.uniform(k2, (bs2, 1, T2, 1), dtype=jnp.float32)
    out2 = jax.block_until_ready(
        robustness_module(x2, tm_max=8, tk_max=128, small_bytes=0))
    ref2 = robustness_reference(x2)
    assert out2.shape == (bs2,)
    assert jnp.allclose(out2, ref2, atol=1e-6), (out2, ref2)

    # Case 3: default tiles -> multi-tile time reduction, batch split into two
    # tiles (dual-core v7x path), ragged tails on both axes, no padding pass.
    bs3, T3 = 50, 9000
    x3 = jax.random.uniform(k3, (bs3, 1, T3, 1), dtype=jnp.float32)
    out3 = jax.block_until_ready(robustness_module(x3))
    ref3 = robustness_reference(x3)
    assert out3.shape == (bs3,)
    assert jnp.allclose(out3, ref3, atol=1e-6), (out3, ref3)

    print("KERNEL_OK")
</pallas_src>

<mosaic_0001>
module attributes {stable_mosaic.version = 11 : i64} {
  func.func @_small_kernel(%arg0: memref<4x128xf32, #tpu.memory_space<vmem>>, %arg1: memref<4x1xf32, #tpu.memory_space<vmem>>) attributes {dimension_semantics = [], scalar_prefetch = 0 : i64, scratch_operands = 0 : i64, tpu.core_type = #tpu.core_type<tc>} {
    %c0 = arith.constant 0 : index
    %c0_0 = arith.constant 0 : index
    %0 = vector.load %arg0[%c0, %c0_0] : memref<4x128xf32, #tpu.memory_space<vmem>>, vector<4x128xf32>
    %cst = arith.constant dense<0x7F800000> : vector<4xf32>
    %1 = vector.multi_reduction <minimumf>, %0, %cst [1] : vector<4x128xf32> to vector<4xf32>
    %2 = vector.shape_cast %1 : vector<4xf32> to vector<4x1xf32>
    %cst_1 = arith.constant 2.500000e-01 : f32
    %3 = vector.broadcast %cst_1 : f32 to vector<4x1xf32>
    %4 = arith.subf %2, %3 : vector<4x1xf32>
    %cst_2 = arith.constant 7.500000e-01 : f32
    %5 = vector.broadcast %cst_2 : f32 to vector<4x1xf32>
    %6 = arith.subf %5, %2 : vector<4x1xf32>
    %7 = arith.minimumf %4, %6 : vector<4x1xf32>
    %c0_3 = arith.constant 0 : index
    %c0_4 = arith.constant 0 : index
    %8 = vector.load %arg1[%c0_3, %c0_4] : memref<4x1xf32, #tpu.memory_space<vmem>>, vector<4x1xf32>
    tpu.vector_store %arg1[%c0_3, %c0_4], %7 {strides = array<i32>} : memref<4x1xf32, #tpu.memory_space<vmem>>, vector<4x1xf32>,
    return
  }
}

</mosaic_0001>

<llo_original>
// kernel: tpu_custom_call.1
$region0: #{tpu_custom_call.1}
  #allocation0 [shape = 'u32[]', space=smem, size = 0x4, offset = 0x4, fixed_abs, tag = 'smem constant byte address 0x4 - core index']
  #allocation1 [shape = 'u32[144,128]{1,0:T(1,128)}', space=vmem, size = 0x12000, scoped, tag = 'internal scratch']
  %s0 = inlined_call_operand.hbm [shape: f32[4,128], index: 0, kind: input, shape index: {}]
  %s1 = inlined_call_operand.vmem [shape: f32[4,1], index: 1, kind: output, shape index: {}]
  %s2 = sld [smem:[#allocation0]]
  $region18: #{tpu_custom_call.1} parent=0
    _
  %s4 = ssub.s32 1, %s2
  %s5 = scalar_select 0, %s4, %s2
  $region1: #{tpu_custom_call.1} parent=0
    #allocation2 [shape = 'u8[2048]{0}', space=vmem, size = 0x800, scoped, tag = 'input window, operand 0, single buffered']
    #allocation3 [shape = 's32[1]{0}', space=sflag, size = 0x4, scoped, tag = 'scoped memory for tpu_custom_call.1']
    %6 = vsyncpa [#allocation3], 0
    // Predicated region
    $region2: #{tpu_custom_call.1} parent=1 // pred_check
      _
    $region3: #{tpu_custom_call.1} parent=1 // pred_check_branch
      %8 = sbr.rel (0) target = $region5
    $region4: #{tpu_custom_call.1} parent=1 // pred_region
      %s10 = ssub.s32 64, 64
      %11 = vsyncadd [#allocation3], %s10
      %s13 = sshll.u32 [#allocation2], 4
      %s14 = int_to_ptr.vmem [resolvable:$true] %s13
      %16 = dma.hbm_to_vmem [thread:$0]  %s0, 64, %s14, [#allocation3]
    $region5: #{tpu_custom_call.1} parent=1 // pred_fallthru
      _
    // Predicated region
    $region6: #{tpu_custom_call.1} parent=1 // pred_check
      _
    $region7: #{tpu_custom_call.1} parent=1 // pred_check_branch
      %18 = sbr.rel (0) target = $region9
    $region8: #{tpu_custom_call.1} parent=1 // pred_region
      %19 = dma.done [#allocation3], 64
    $region9: #{tpu_custom_call.1} parent=1 // pred_fallthru
      _
    %v20 = vld [vmem:[#allocation2] sm:$0xf]
    %vm21 = vcmask 1043456
    %v22 = vsel %vm21, %v20, inf
    %23 = vmin.xlane.f32.xlu0 %v22
    %v24 = vpop.xlane.xlu0 %23
    %v25 = vsub.f32 %v24, 0.25
    %v26 = vsub.f32 0.75, %v24
    %v27 = vmin.f32 %v25, %v26
    %vm28 = vcmask 3072
    %29 = vst.msk [vmem:[%s1] sm:$0xf] %vm28, %v27
    // Predicated region
    $region10: #{tpu_custom_call.1} parent=1 // pred_check
      _
    $region11: #{tpu_custom_call.1} parent=1 // pred_check_branch
      %31 = sbr.rel (0) target = $region13
    $region12: #{tpu_custom_call.1} parent=1 // pred_region
      _
    $region13: #{tpu_custom_call.1} parent=1 // pred_fallthru
      _
    // Predicated region
    $region14: #{tpu_custom_call.1} parent=1 // pred_check
      _
    $region15: #{tpu_custom_call.1} parent=1 // pred_check_branch
      %33 = sbr.rel (0) target = $region17
    $region16: #{tpu_custom_call.1} parent=1 // pred_region
      _
    $region17: #{tpu_custom_call.1} parent=1 // pred_fallthru
      _
    %34 = vsyncpa [#allocation3], 1

</llo_original>
